<compile_context>
chip_gen: v5e
topology: v5e:2x2
jax: 0.10.0
libtpu: 0.0.40
codegen_flags: <defaults>
</compile_context>

<pallas_src>
import functools

import jax
import jax.numpy as jnp
from jax.experimental import pallas as pl
from jax.experimental.pallas import tpu as pltpu


def _round_up(n: int, m: int) -> int:
    return ((n + m - 1) // m) * m


def _round_down(n: int, m: int) -> int:
    return (n // m) * m


def _pad_to(a, shape):
    """Zero-pad `a` up to `shape` (no-op if already that shape)."""
    if tuple(a.shape) == tuple(shape):
        return a
    return jnp.pad(a, [(0, t - s) for s, t in zip(a.shape, shape)])


_W1_TILE_BYTES = 2 << 20  # target ~2 MiB bf16 (TK, Hp) W1 tile


def _choose_tk(d: int, hp: int) -> int:
    """K-tile: multiple of 128, sized so the bf16 (TK, Hp) W1 tile is ~2 MiB."""
    tk = max(128, _round_down(_W1_TILE_BYTES // (hp * 2), 128))
    return min(_round_up(d, 128), tk)


def _batch_tile_cap() -> int:
    """256-row LHS tiles on v6e/v7x (256-wide MXU); 128 on v5e (4x128^2 MXU)."""
    try:
        kind = jax.devices()[0].device_kind.lower()
    except Exception:
        return 256
    if "v5" in kind and ("lite" in kind or "5e" in kind):
        return 128
    return 256


def mlp_kernel(x_ref, w1_ref, b1_ref, w2_ref, b2_ref, o_ref, acc_ref):
    """out = relu(x @ W1 + b1) @ W2 + b2, K-tiled over the flattened-image dim.

    grid = (batch_tiles, k_tiles); k is the innermost (reduction) axis.
    acc_ref holds the f32 partial x @ W1 for the current batch tile; the
    ReLU + second-matmul epilogue runs only on the last k step.
    """
    k = pl.program_id(1)

    @pl.when(k == 0)
    def _init():
        acc_ref[...] = jnp.zeros_like(acc_ref)

    # MXU: bf16 x-tile @ bf16 W1-tile with f32 accumulation. The f32->bf16 cast of
    # x is a VPU op and hides under the matmul.
    acc_ref[...] += jnp.dot(
        x_ref[...].astype(jnp.bfloat16), w1_ref[...],
        preferred_element_type=jnp.float32)

    @pl.when(k == pl.num_programs(1) - 1)
    def _finalize():
        h = jnp.maximum(acc_ref[...] + b1_ref[...], 0.0)       # bias + ReLU (VPU, f32)
        out = jnp.dot(h.astype(w2_ref.dtype), w2_ref[...],     # MXU, f32 accumulate
                      preferred_element_type=jnp.float32)
        o_ref[...] = (out + b2_ref[...]).astype(o_ref.dtype)


def prepare_mlp_params(w1, b1, w2, b2):
    """One-time pad + cast of Linear params into MXU/lane-friendly layout.

    w1: (D, H), b1: (H,), w2: (H, O), b2: (O,)  (transposed vs. nn.Linear weights).
    Zero-padding of rows/columns is numerically inert through ReLU and matmul2.
    Call once at parameter-creation time — NOT inside the per-call forward path.
    """
    D, H = w1.shape
    O = w2.shape[1]
    Hp = _round_up(H, 128)
    Op = _round_up(O, 128)
    tk = _choose_tk(D, Hp)
    Dp = _round_up(D, tk)               # multiple of tk (and of 128)
    w1_p = _pad_to(w1, (Dp, Hp)).astype(jnp.bfloat16)
    w2_p = _pad_to(w2, (Hp, Op)).astype(jnp.bfloat16)
    b1_p = _pad_to(b1.reshape(1, H), (1, Hp)).astype(jnp.float32)
    b2_p = _pad_to(b2.reshape(1, O), (1, Op)).astype(jnp.float32)
    return w1_p, b1_p, w2_p, b2_p


def nonlinear_vision_forward(x_nchw, w1_p, b1_p, w2_p, b2_p, *, out_features):
    """Flatten NCHW input and run the fused Pallas MLP kernel. Returns (B, O) f32."""
    B = x_nchw.shape[0]
    Dp, Hp = w1_p.shape
    Op = w2_p.shape[1]

    # ---- glue: nn.Flatten on NCHW ----
    x2d = x_nchw.reshape(B, -1)
    D = x2d.shape[1]

    # K tile (multiple of 128; divides Dp by construction of prepare_mlp_params).
    TK = _choose_tk(Dp, Hp)
    n_k = Dp // TK

    # Batch tile: multiple of 8 (f32 sublane), per-chip cap; grid = cdiv(B, TB)
    # (no forced extra steps feeding zero rows).
    TB = min(_batch_tile_cap(), _round_up(max(B, 1), 8))
    n_b = pl.cdiv(B, TB)
    Bp = n_b * TB

    # Pad x (stays f32; bf16 cast happens inside the kernel).
    x_p = _pad_to(x2d, (Bp, Dp)).astype(jnp.float32)

    # VMEM budget: double-buffered pipeline buffers + f32 accumulator + margin.
    vmem_bytes = (2 * (TB * TK * 4 + TK * Hp * 2 + Hp * 4 + Hp * Op * 2 + Op * 4
                       + TB * Op * 4)
                  + TB * Hp * 4 + (4 << 20))
    vmem_limit = min(64 << 20, max(32 << 20, vmem_bytes))

    # Advisory cost on true problem dims (Hp used for hidden; true H not visible here).
    cost = pl.CostEstimate(
        flops=2 * B * (D * Hp + Hp * out_features),
        transcendentals=0,
        bytes_accessed=(B * D * 4 + Dp * Hp * 2 + Hp * Op * 2 + Hp * 4 + Op * 4
                        + B * out_features * 4),
    )

    out_p = pl.pallas_call(
        mlp_kernel,
        out_shape=jax.ShapeDtypeStruct((Bp, Op), jnp.float32),
        grid_spec=pltpu.PrefetchScalarGridSpec(
            num_scalar_prefetch=0,
            grid=(n_b, n_k),
            in_specs=[
                pl.BlockSpec((TB, TK), lambda i, k: (i, k)),   # x: batch x K tiles (f32)
                pl.BlockSpec((TK, Hp), lambda i, k: (k, 0)),   # W1: streamed over K
                pl.BlockSpec((1, Hp), lambda i, k: (0, 0)),    # b1 (grid-invariant)
                pl.BlockSpec((Hp, Op), lambda i, k: (0, 0)),   # W2 (grid-invariant)
                pl.BlockSpec((1, Op), lambda i, k: (0, 0)),    # b2 (grid-invariant)
            ],
            out_specs=pl.BlockSpec((TB, Op), lambda i, k: (i, 0)),
            scratch_shapes=[pltpu.VMEM((TB, Hp), jnp.float32)],
        ),
        compiler_params=pltpu.CompilerParams(
            dimension_semantics=("parallel", "arbitrary"),
            vmem_limit_bytes=vmem_limit,
        ),
        cost_estimate=cost,
    )(x_p, w1_p, b1_p, w2_p, b2_p)

    # TODO(synk): single-buffer the grid-invariant b1/W2/b2 specs with
    # pipeline_mode=pl.Buffered(1) once verified on the target jax version — halves
    # their resident VMEM, which matters first on v7x's 64 MiB.

    # Strip batch / lane padding (module contract: (B, out_features) float32).
    return out_p[:B, :out_features]


def init_linear_params(key, fan_in, fan_out):
    """Deterministic init mimicking nn.Linear default (uniform +/- 1/sqrt(fan_in))."""
    kw, kb = jax.random.split(key)
    bound = 1.0 / (fan_in ** 0.5)
    w = jax.random.uniform(kw, (fan_in, fan_out), jnp.float32, -bound, bound)
    b = jax.random.uniform(kb, (fan_out,), jnp.float32, -bound, bound)
    return w, b


if __name__ == "__main__":
    # Small shapes consistent with the module's forward:
    #   input image: (batch=8, C=1, H=16, W=16) -> input_shape = 256
    #   hidden_units = 32, output_shape (classes) = 10
    B, C, HH, WW = 8, 1, 16, 16
    input_shape = C * HH * WW
    hidden_units = 32
    output_shape = 10

    root = jax.random.PRNGKey(0)
    kx, k1, k2 = jax.random.split(root, 3)

    x = jax.random.normal(kx, (B, C, HH, WW), jnp.float32)
    w1, b1 = init_linear_params(k1, input_shape, hidden_units)
    w2, b2 = init_linear_params(k2, hidden_units, output_shape)

    # One-time weight prep (padding + bf16 cast), outside the per-call path.
    params = prepare_mlp_params(w1, b1, w2, b2)

    fwd = jax.jit(functools.partial(nonlinear_vision_forward,
                                    out_features=output_shape))
    out = jax.block_until_ready(fwd(x, *params))
    assert out.shape == (B, output_shape)

    # Reference 1: same math with the same bf16 input/weight quantization (tight check).
    xq = x.reshape(B, -1).astype(jnp.bfloat16).astype(jnp.float32)
    w1q = w1.astype(jnp.bfloat16).astype(jnp.float32)
    w2q = w2.astype(jnp.bfloat16).astype(jnp.float32)
    h_ref = jnp.maximum(xq @ w1q + b1, 0.0)
    ref_bf16 = h_ref.astype(jnp.bfloat16).astype(jnp.float32) @ w2q + b2
    assert jnp.allclose(out, ref_bf16, atol=1e-3, rtol=1e-3)

    # Reference 2: full-f32 module math (loose check — bf16 storage/compute only).
    ref_f32 = jnp.maximum(x.reshape(B, -1) @ w1 + b1, 0.0) @ w2 + b2
    assert jnp.allclose(out, ref_f32, atol=5e-2, rtol=5e-2)

    print("KERNEL_OK")
</pallas_src>

<mosaic_0001>
module attributes {stable_mosaic.version = 11 : i64} {
  func.func @mlp_kernel(%arg0: i32, %arg1: i32, %arg2: memref<8x256xf32, #tpu.memory_space<vmem>>, %arg3: memref<256x128xbf16, #tpu.memory_space<vmem>>, %arg4: memref<1x128xf32, #tpu.memory_space<vmem>>, %arg5: memref<128x128xbf16, #tpu.memory_space<vmem>>, %arg6: memref<1x128xf32, #tpu.memory_space<vmem>>, %arg7: memref<8x128xf32, #tpu.memory_space<vmem>>, %arg8: memref<8x128xf32, #tpu.memory_space<vmem>>) attributes {dimension_semantics = [#tpu.dimension_semantics<parallel>, #tpu.dimension_semantics<arbitrary>], iteration_bounds = array<i64: 1, 1>, scalar_prefetch = 0 : i64, scratch_operands = 1 : i64, tpu.core_type = #tpu.core_type<tc>, window_params = [{transform_indices = @transform_0, window_bounds = array<i64: 8, 256>}, {transform_indices = @transform_1, window_bounds = array<i64: 256, 128>}, {pipeline_mode = #tpu.pipeline_mode<synchronous>, transform_indices = @transform_2, window_bounds = array<i64: 1, 128>}, {pipeline_mode = #tpu.pipeline_mode<synchronous>, transform_indices = @transform_3, window_bounds = array<i64: 128, 128>}, {pipeline_mode = #tpu.pipeline_mode<synchronous>, transform_indices = @transform_4, window_bounds = array<i64: 1, 128>}, {transform_indices = @transform_5, window_bounds = array<i64: 8, 128>}]} {
    %c0_i32 = arith.constant 0 : i32
    %0 = arith.cmpi eq, %arg1, %c0_i32 : i32
    %1 = arith.extui %0 : i1 to i32
    %c0_i32_0 = arith.constant 0 : i32
    %2 = arith.cmpi ne, %1, %c0_i32_0 : i32
    scf.if %2 {
      %cst_10 = arith.constant 0.000000e+00 : f32
      %13 = vector.broadcast %cst_10 : f32 to vector<8x128xf32>
      %c0_11 = arith.constant 0 : index
      %c0_12 = arith.constant 0 : index
      %14 = vector.load %arg8[%c0_11, %c0_12] : memref<8x128xf32, #tpu.memory_space<vmem>>, vector<8x128xf32>
      tpu.vector_store %arg8[%c0_11, %c0_12], %13 {strides = array<i32>} : memref<8x128xf32, #tpu.memory_space<vmem>>, vector<8x128xf32>,
    } else {
    }
    %c0 = arith.constant 0 : index
    %c0_1 = arith.constant 0 : index
    %3 = vector.load %arg8[%c0, %c0_1] : memref<8x128xf32, #tpu.memory_space<vmem>>, vector<8x128xf32>
    %c0_2 = arith.constant 0 : index
    %c0_3 = arith.constant 0 : index
    %4 = vector.load %arg2[%c0_2, %c0_3] : memref<8x256xf32, #tpu.memory_space<vmem>>, vector<8x256xf32>
    %5 = arith.truncf %4 : vector<8x256xf32> to vector<8x256xbf16>
    %c0_4 = arith.constant 0 : index
    %c0_5 = arith.constant 0 : index
    %6 = vector.load %arg3[%c0_4, %c0_5] : memref<256x128xbf16, #tpu.memory_space<vmem>>, vector<256x128xbf16>
    %cst = arith.constant dense<0.000000e+00> : vector<8x128xf32>
    %7 = tpu.matmul %5, %6, %cst {dimension_numbers = #tpu.dot_dimension_numbers<[1], [0], [0], [1], [0, 0, 1, 1], [], []>} : vector<8x256xbf16>, vector<256x128xbf16>, vector<8x128xf32> -> vector<8x128xf32>
    %8 = arith.addf %3, %7 : vector<8x128xf32>
    %c0_6 = arith.constant 0 : index
    %c0_7 = arith.constant 0 : index
    %9 = vector.load %arg8[%c0_6, %c0_7] : memref<8x128xf32, #tpu.memory_space<vmem>>, vector<8x128xf32>
    tpu.vector_store %arg8[%c0_6, %c0_7], %8 {strides = array<i32>} : memref<8x128xf32, #tpu.memory_space<vmem>>, vector<8x128xf32>,
    %c0_i32_8 = arith.constant 0 : i32
    %10 = arith.cmpi eq, %arg1, %c0_i32_8 : i32
    %11 = arith.extui %10 : i1 to i32
    %c0_i32_9 = arith.constant 0 : i32
    %12 = arith.cmpi ne, %11, %c0_i32_9 : i32
    scf.if %12 {
      %c0_10 = arith.constant 0 : index
      %c0_11 = arith.constant 0 : index
      %13 = vector.load %arg8[%c0_10, %c0_11] : memref<8x128xf32, #tpu.memory_space<vmem>>, vector<8x128xf32>
      %c0_12 = arith.constant 0 : index
      %c0_13 = arith.constant 0 : index
      %14 = vector.load %arg4[%c0_12, %c0_13] : memref<1x128xf32, #tpu.memory_space<vmem>>, vector<1x128xf32>
      %15 = vector.broadcast %14 : vector<1x128xf32> to vector<8x128xf32>
      %16 = arith.addf %13, %15 : vector<8x128xf32>
      %cst_14 = arith.constant 0.000000e+00 : f32
      %17 = vector.broadcast %cst_14 : f32 to vector<8x128xf32>
      %18 = arith.maximumf %16, %17 : vector<8x128xf32>
      %19 = arith.truncf %18 : vector<8x128xf32> to vector<8x128xbf16>
      %c0_15 = arith.constant 0 : index
      %c0_16 = arith.constant 0 : index
      %20 = vector.load %arg5[%c0_15, %c0_16] : memref<128x128xbf16, #tpu.memory_space<vmem>>, vector<128x128xbf16>
      %cst_17 = arith.constant dense<0.000000e+00> : vector<8x128xf32>
      %21 = tpu.matmul %19, %20, %cst_17 {dimension_numbers = #tpu.dot_dimension_numbers<[1], [0], [0], [1], [0, 0, 1, 1], [], []>} : vector<8x128xbf16>, vector<128x128xbf16>, vector<8x128xf32> -> vector<8x128xf32>
      %c0_18 = arith.constant 0 : index
      %c0_19 = arith.constant 0 : index
      %22 = vector.load %arg6[%c0_18, %c0_19] : memref<1x128xf32, #tpu.memory_space<vmem>>, vector<1x128xf32>
      %23 = vector.broadcast %22 : vector<1x128xf32> to vector<8x128xf32>
      %24 = arith.addf %21, %23 : vector<8x128xf32>
      %c0_20 = arith.constant 0 : index
      %c0_21 = arith.constant 0 : index
      %25 = vector.load %arg7[%c0_20, %c0_21] : memref<8x128xf32, #tpu.memory_space<vmem>>, vector<8x128xf32>
      tpu.vector_store %arg7[%c0_20, %c0_21], %24 {strides = array<i32>} : memref<8x128xf32, #tpu.memory_space<vmem>>, vector<8x128xf32>,
    } else {
    }
    return
  }
  func.func @transform_0(%arg0: i32, %arg1: i32) -> (i32, i32) {
    %c0_i32 = arith.constant 0 : i32
    return %arg0, %arg1 : i32, i32
  }
  func.func @transform_1(%arg0: i32, %arg1: i32) -> (i32, i32) {
    %c0_i32 = arith.constant 0 : i32
    %c0_i32_0 = arith.constant 0 : i32
    return %arg1, %c0_i32 : i32, i32
  }
  func.func @transform_2(%arg0: i32, %arg1: i32) -> (i32, i32) {
    %c0_i32 = arith.constant 0 : i32
    %c0_i32_0 = arith.constant 0 : i32
    %c0_i32_1 = arith.constant 0 : i32
    return %c0_i32, %c0_i32_0 : i32, i32
  }
  func.func @transform_3(%arg0: i32, %arg1: i32) -> (i32, i32) {
    %c0_i32 = arith.constant 0 : i32
    %c0_i32_0 = arith.constant 0 : i32
    %c0_i32_1 = arith.constant 0 : i32
    return %c0_i32, %c0_i32_0 : i32, i32
  }
  func.func @transform_4(%arg0: i32, %arg1: i32) -> (i32, i32) {
    %c0_i32 = arith.constant 0 : i32
    %c0_i32_0 = arith.constant 0 : i32
    %c0_i32_1 = arith.constant 0 : i32
    return %c0_i32, %c0_i32_0 : i32, i32
  }
  func.func @transform_5(%arg0: i32, %arg1: i32) -> (i32, i32) {
    %c0_i32 = arith.constant 0 : i32
    %c0_i32_0 = arith.constant 0 : i32
    return %arg0, %c0_i32 : i32, i32
  }
}

</mosaic_0001>

<llo_original>
// kernel: nonlinear_vision_forward.1
$region0: #{nonlinear_vision_forward.1}
  #allocation0 [shape = 'u32[]', space=smem, size = 0x4, offset = 0x4, fixed_abs, tag = 'smem constant byte address 0x4 - core index']
  #allocation1 [shape = 'u32[72,128]{1,0:T(1,128)}', space=vmem, size = 0x9000, scoped, tag = 'internal scratch']
  #allocation2 [shape = 'f32[8,128]{1,0:T(8,128)}', space=vmem, size = 0x1000, scoped, tag = 'scratch operand']
  %s0 = inlined_call_operand.vmem [shape: f32[8,256], index: 0, kind: input, shape index: {}]
  %s1 = inlined_call_operand.vmem [shape: bf16[256,128], index: 1, kind: input, shape index: {}]
  %s2 = inlined_call_operand.vmem [shape: f32[1,128], index: 2, kind: input, shape index: {}]
  %s3 = inlined_call_operand.hbm [shape: bf16[128,128], index: 3, kind: input, shape index: {}]
  %s4 = inlined_call_operand.vmem [shape: f32[1,128], index: 4, kind: input, shape index: {}]
  %s5 = inlined_call_operand.hbm [shape: f32[8,128], index: 5, kind: output, shape index: {}]
  %s6 = sld [smem:[#allocation0]]
  $region42: #{nonlinear_vision_forward.1} parent=0
    _
  %s8 = ssub.s32 1, %s6
  %s9 = scalar_select 0, %s8, %s6
  $region1: #{nonlinear_vision_forward.1} parent=0
    #allocation3 [shape = 'u8[32768]{0}', space=vmem, size = 0x8000, scoped, tag = 'input window, operand 3, single buffered']
    #allocation4 [shape = 's32[1]{0}', space=sflag, size = 0x4, scoped, tag = 'scoped memory for nonlinear_vision_forward.1']
    #allocation5 [shape = 's32[1]{0}', space=sflag, size = 0x4, scoped, tag = 'scoped memory for nonlinear_vision_forward.1']
    #allocation6 [shape = 'u8[4096]{0}', space=vmem, size = 0x1000, scoped, tag = 'output window, operand 0, single buffered']
    %10 = vsyncpa [#allocation4], 0
    %11 = vsyncpa [#allocation5], 0
    // Predicated region
    $region2: #{nonlinear_vision_forward.1} parent=1 // pred_check
      _
    $region3: #{nonlinear_vision_forward.1} parent=1 // pred_check_branch
      %13 = sbr.rel (0) target = $region5
    $region4: #{nonlinear_vision_forward.1} parent=1 // pred_region
      _
    $region5: #{nonlinear_vision_forward.1} parent=1 // pred_fallthru
      _
    // Predicated region
    $region6: #{nonlinear_vision_forward.1} parent=1 // pred_check
      _
    $region7: #{nonlinear_vision_forward.1} parent=1 // pred_check_branch
      %15 = sbr.rel (0) target = $region9
    $region8: #{nonlinear_vision_forward.1} parent=1 // pred_region
      _
    $region9: #{nonlinear_vision_forward.1} parent=1 // pred_fallthru
      _
    // Predicated region
    $region10: #{nonlinear_vision_forward.1} parent=1 // pred_check
      _
    $region11: #{nonlinear_vision_forward.1} parent=1 // pred_check_branch
      %17 = sbr.rel (0) target = $region13
    $region12: #{nonlinear_vision_forward.1} parent=1 // pred_region
      _
    $region13: #{nonlinear_vision_forward.1} parent=1 // pred_fallthru
      _
    // Predicated region
    $region14: #{nonlinear_vision_forward.1} parent=1 // pred_check
      _
    $region15: #{nonlinear_vision_forward.1} parent=1 // pred_check_branch
      %19 = sbr.rel (0) target = $region17
    $region16: #{nonlinear_vision_forward.1} parent=1 // pred_region
      %21 = vsyncadd [#allocation4], 0
      %s22 = sshll.u32 %s3, 4
      %s23 = int_to_ptr.hbm [resolvable:$true] %s22
      %s24 = sshll.u32 [#allocation3], 4
      %s25 = int_to_ptr.vmem [resolvable:$true] %s24
      %30 = dma.hbm_to_vmem [thread:$0]  %s23, 1024, %s25, [#allocation4], 64, 64, 4
    $region17: #{nonlinear_vision_forward.1} parent=1 // pred_fallthru
      _
    // Predicated region
    $region18: #{nonlinear_vision_forward.1} parent=1 // pred_check
      _
    $region19: #{nonlinear_vision_forward.1} parent=1 // pred_check_branch
      %32 = sbr.rel (0) target = $region21
    $region20: #{nonlinear_vision_forward.1} parent=1 // pred_region
      _
    $region21: #{nonlinear_vision_forward.1} parent=1 // pred_fallthru
      _
    // Predicated region
    $region22: #{nonlinear_vision_forward.1} parent=1 // pred_check
      _
    $region23: #{nonlinear_vision_forward.1} parent=1 // pred_check_branch
      %34 = sbr.rel (0) target = $region25
    $region24: #{nonlinear_vision_forward.1} parent=1 // pred_region
      %36 = dma.done [#allocation4], 1024
    $region25: #{nonlinear_vision_forward.1} parent=1 // pred_fallthru
      _
    %p37 = scmp.eq.s32.totalorder 0, 0
    // Predicated region
    $region26: #{nonlinear_vision_forward.1} parent=1 // pred_check
      %p38 = pneg %p37
    $region27: #{nonlinear_vision_forward.1} parent=1 // pred_check_branch
      %40 = sbr.rel (%p38) target = $region29
    $region28: #{nonlinear_vision_forward.1} parent=1 // pred_region
      %41 = vst [vmem:[#allocation2] sm:$0xff] 0.0
    $region29: #{nonlinear_vision_forward.1} parent=1 // pred_fallthru
      _
    %v42 = vld [vmem:[#allocation2] sm:$0xff]
    %v43 = vld [vmem:[%s0] sm:$0xff]
    %v44 = vld [vmem:[%s0 + $0x8] sm:$0xff]
    %v45 = vpack.c.bf16 %v43, %v43
    %v46 = vpack.c.bf16 %v44, %v44
    %v47 = vld [vmem:[%s1] sm:$0xf]
    %v48 = vld [vmem:[%s1 + $0x4] sm:$0xf]
    %v49 = vld [vmem:[%s1 + $0x8] sm:$0xf]
    %v50 = vld [vmem:[%s1 + $0xc] sm:$0xf]
    %v51 = vld [vmem:[%s1 + $0x10] sm:$0xf]
    %v52 = vld [vmem:[%s1 + $0x14] sm:$0xf]
    %v53 = vld [vmem:[%s1 + $0x18] sm:$0xf]
    %v54 = vld [vmem:[%s1 + $0x1c] sm:$0xf]
    %v55 = vld [vmem:[%s1 + $0x20] sm:$0xf]
    %v56 = vld [vmem:[%s1 + $0x24] sm:$0xf]
    %v57 = vld [vmem:[%s1 + $0x28] sm:$0xf]
    %v58 = vld [vmem:[%s1 + $0x2c] sm:$0xf]
    %v59 = vld [vmem:[%s1 + $0x30] sm:$0xf]
    %v60 = vld [vmem:[%s1 + $0x34] sm:$0xf]
    %v61 = vld [vmem:[%s1 + $0x38] sm:$0xf]
    %v62 = vld [vmem:[%s1 + $0x3c] sm:$0xf]
    %v63 = vld [vmem:[%s1 + $0x40] sm:$0xf]
    %v64 = vld [vmem:[%s1 + $0x44] sm:$0xf]
    %v65 = vld [vmem:[%s1 + $0x48] sm:$0xf]
    %v66 = vld [vmem:[%s1 + $0x4c] sm:$0xf]
    %v67 = vld [vmem:[%s1 + $0x50] sm:$0xf]
    %v68 = vld [vmem:[%s1 + $0x54] sm:$0xf]
    %v69 = vld [vmem:[%s1 + $0x58] sm:$0xf]
    %v70 = vld [vmem:[%s1 + $0x5c] sm:$0xf]
    %v71 = vld [vmem:[%s1 + $0x60] sm:$0xf]
    %v72 = vld [vmem:[%s1 + $0x64] sm:$0xf]
    %v73 = vld [vmem:[%s1 + $0x68] sm:$0xf]
    %v74 = vld [vmem:[%s1 + $0x6c] sm:$0xf]
    %v75 = vld [vmem:[%s1 + $0x70] sm:$0xf]
    %v76 = vld [vmem:[%s1 + $0x74] sm:$0xf]
    %v77 = vld [vmem:[%s1 + $0x78] sm:$0xf]
    %v78 = vld [vmem:[%s1 + $0x7c] sm:$0xf]
    %v111 = vunpack.c.l.b16 %v47
    %v112 = vunpack.c.l.b16 %v48
    %v113 = vunpack.c.l.b16 %v49
    %v114 = vunpack.c.l.b16 %v50
    %v115 = vunpack.c.l.b16 %v51
    %v116 = vunpack.c.l.b16 %v52
    %v117 = vunpack.c.l.b16 %v53
    %v118 = vunpack.c.l.b16 %v54
    %v119 = vunpack.c.l.b16 %v55
    %v120 = vunpack.c.l.b16 %v56
    %v121 = vunpack.c.l.b16 %v57
    %v122 = vunpack.c.l.b16 %v58
    %v123 = vunpack.c.l.b16 %v59
    %v124 = vunpack.c.l.b16 %v60
    %v125 = vunpack.c.l.b16 %v61
    %v126 = vunpack.c.l.b16 %v62
    %v127 = vunpack.c.l.b16 %v63
    %v128 = vunpack.c.l.b16 %v64
    %v129 = vunpack.c.l.b16 %v65
    %v130 = vunpack.c.l.b16 %v66
    %v131 = vunpack.c.l.b16 %v67
    %v132 = vunpack.c.l.b16 %v68
    %v133 = vunpack.c.l.b16 %v69
    %v134 = vunpack.c.l.b16 %v70
    %v135 = vunpack.c.l.b16 %v71
    %v136 = vunpack.c.l.b16 %v72
    %v137 = vunpack.c.l.b16 %v73
    %v138 = vunpack.c.l.b16 %v74
    %v139 = vunpack.c.l.b16 %v75
    %v140 = vunpack.c.l.b16 %v76
    %v141 = vunpack.c.l.b16 %v77
    %v142 = vunpack.c.l.b16 %v78
    %v143 = vpack.c.b16 %v112, %v111
    %v144 = vpack.c.b16 %v114, %v113
    %v145 = vpack.c.b16 %v116, %v115
    %v146 = vpack.c.b16 %v118, %v117
    %v147 = vpack.c.b16 %v120, %v119
    %v148 = vpack.c.b16 %v122, %v121
    %v149 = vpack.c.b16 %v124, %v123
    %v150 = vpack.c.b16 %v126, %v125
    %v151 = vpack.c.b16 %v128, %v127
    %v152 = vpack.c.b16 %v130, %v129
    %v153 = vpack.c.b16 %v132, %v131
    %v154 = vpack.c.b16 %v134, %v133
    %v155 = vpack.c.b16 %v136, %v135
    %v156 = vpack.c.b16 %v138, %v137
    %v157 = vpack.c.b16 %v140, %v139
    %v158 = vpack.c.b16 %v142, %v141
    %175 = vmatpush.bf16.msra.mxu0 %v150
    %176 = vmatpush.bf16.msra.mxu0 %v149
    %177 = vmatpush.bf16.msra.mxu0 %v148
    %178 = vmatpush.bf16.msra.mxu0 %v147
    %179 = vmatpush.bf16.msra.mxu0 %v146
    %180 = vmatpush.bf16.msra.mxu0 %v145
    %181 = vmatpush.bf16.msra.mxu0 %v144
    %182 = vmatpush.bf16.msra.mxu0 %v143
    %183 = vmatmul.bf16.gmra.mxu0 %v45
    %v184 = vpop.f32.mrf.mxu0
    %v185 = vadd.f32 0.0, %v184
    %v186 = vpop.f32.mrf.mxu0
    %187 = vdwg.mxu0
    %188 = vmatpush.bf16.msra.mxu0 %v158
    %189 = vmatpush.bf16.msra.mxu0 %v157
    %190 = vmatpush.bf16.msra.mxu0 %v156
    %191 = vmatpush.bf16.msra.mxu0 %v155
    %192 = vmatpush.bf16.msra.mxu0 %v154
    %193 = vmatpush.bf16.msra.mxu0 %v153
    %194 = vmatpush.bf16.msra.mxu0 %v152
    %195 = vmatpush.bf16.msra.mxu0 %v151
    %196 = vmatmul.bf16.gmra.mxu0 %v46
    %v197 = vpop.f32.mrf.mxu0
    %v198 = vadd.f32 %v185, %v197
    %v199 = vpop.f32.mrf.mxu0
    %200 = vdwg.mxu0
    %v201 = vadd.f32 %v42, %v198
    %202 = vst [vmem:[#allocation2] sm:$0xff] %v201
    // Predicated region
    $region30: #{nonlinear_vision_forward.1} parent=1 // pred_check
      %p203 = pneg %p37
    $region31: #{nonlinear_vision_forward.1} parent=1 // pred_check_branch
      %205 = sbr.rel (%p203) target = $region33
    $region32: #{nonlinear_vision_forward.1} parent=1 // pred_region
      %v206 = vld [vmem:[#allocation2] sm:$0xff]
      %v207 = vld [vmem:[%s2] sm:$0x1]
      %v209 = vperm.slane %v207, 0
      %v211 = vadd.f32 %v206, %v209
      %v212 = vmax.f32 %v211, 0.0
      %v213 = vpack.c.bf16 %v212, %v212
      %v214 = vld [vmem:[#allocation3] sm:$0xf]
      %v215 = vld [vmem:[#allocation3 + $0x4] sm:$0xf]
      %v216 = vld [vmem:[#allocation3 + $0x8] sm:$0xf]
      %v217 = vld [vmem:[#allocation3 + $0xc] sm:$0xf]
      %v218 = vld [vmem:[#allocation3 + $0x10] sm:$0xf]
      %v219 = vld [vmem:[#allocation3 + $0x14] sm:$0xf]
      %v220 = vld [vmem:[#allocation3 + $0x18] sm:$0xf]
      %v221 = vld [vmem:[#allocation3 + $0x1c] sm:$0xf]
      %v222 = vld [vmem:[#allocation3 + $0x20] sm:$0xf]
      %v223 = vld [vmem:[#allocation3 + $0x24] sm:$0xf]
      %v224 = vld [vmem:[#allocation3 + $0x28] sm:$0xf]
      %v225 = vld [vmem:[#allocation3 + $0x2c] sm:$0xf]
      %v226 = vld [vmem:[#allocation3 + $0x30] sm:$0xf]
      %v227 = vld [vmem:[#allocation3 + $0x34] sm:$0xf]
      %v228 = vld [vmem:[#allocation3 + $0x38] sm:$0xf]
      %v229 = vld [vmem:[#allocation3 + $0x3c] sm:$0xf]
      %v230 = vld [vmem:[%s4] sm:$0x1]
      %v232 = vperm.slane %v230, 0
      %v250 = vunpack.c.l.b16 %v214
      %v251 = vunpack.c.l.b16 %v215
      %v252 = vunpack.c.l.b16 %v216
      %v253 = vunpack.c.l.b16 %v217
      %v254 = vunpack.c.l.b16 %v218
      %v255 = vunpack.c.l.b16 %v219
      %v256 = vunpack.c.l.b16 %v220
      %v257 = vunpack.c.l.b16 %v221
      %v258 = vunpack.c.l.b16 %v222
      %v259 = vunpack.c.l.b16 %v223
      %v260 = vunpack.c.l.b16 %v224
      %v261 = vunpack.c.l.b16 %v225
      %v262 = vunpack.c.l.b16 %v226
      %v263 = vunpack.c.l.b16 %v227
      %v264 = vunpack.c.l.b16 %v228
      %v265 = vunpack.c.l.b16 %v229
      %v266 = vpack.c.b16 %v251, %v250
      %v267 = vpack.c.b16 %v253, %v252
      %v268 = vpack.c.b16 %v255, %v254
      %v269 = vpack.c.b16 %v257, %v256
      %v270 = vpack.c.b16 %v259, %v258
      %v271 = vpack.c.b16 %v261, %v260
      %v272 = vpack.c.b16 %v263, %v262
      %v273 = vpack.c.b16 %v265, %v264
      %282 = vmatpush.bf16.msra.mxu0 %v273
      %283 = vmatpush.bf16.msra.mxu0 %v272
      %284 = vmatpush.bf16.msra.mxu0 %v271
      %285 = vmatpush.bf16.msra.mxu0 %v270
      %286 = vmatpush.bf16.msra.mxu0 %v269
      %287 = vmatpush.bf16.msra.mxu0 %v268
      %288 = vmatpush.bf16.msra.mxu0 %v267
      %289 = vmatpush.bf16.msra.mxu0 %v266
      %290 = vmatmul.bf16.gmra.mxu0 %v213
      %v291 = vpop.f32.mrf.mxu0
      %v292 = vadd.f32 %v232, %v291
      %v293 = vpop.f32.mrf.mxu0
      %294 = vdwg.mxu0
      %295 = vst [vmem:[#allocation6] sm:$0xff] %v292
    $region33: #{nonlinear_vision_forward.1} parent=1 // pred_fallthru
      _
    // Predicated region
    $region34: #{nonlinear_vision_forward.1} parent=1 // pred_check
      _
    $region35: #{nonlinear_vision_forward.1} parent=1 // pred_check_branch
      %297 = sbr.rel (0) target = $region37
    $region36: #{nonlinear_vision_forward.1} parent=1 // pred_region
      %299 = vsyncadd [#allocation5], 0
      %s301 = sshll.u32 [#allocation6], 4
      %s302 = int_to_ptr.vmem [resolvable:$true] %s301
      %s303 = sshll.u32 %s5, 4
      %s304 = int_to_ptr.hbm [resolvable:$true] %s303
      %306 = dma.vmem_to_hbm [thread:$0]  %s302, 128, %s304, [#allocation5]
    $region37: #{nonlinear_vision_forward.1} parent=1 // pred_fallthru
      _
    // Predicated region
    $region38: #{nonlinear_vision_forward.1} parent=1 // pred_check
      _
    $region39: #{nonlinear_vision_forward.1} parent=1 // pred_check_branch
      %308 = sbr.rel (0) target = $region41
    $region40: #{nonlinear_vision_forward.1} parent=1 // pred_region
      %310 = dma.done [#allocation5], 128
    $region41: #{nonlinear_vision_forward.1} parent=1 // pred_fallthru
      _
    %311 = vsyncpa [#allocation4], 1
    %312 = vsyncpa [#allocation5], 1

</llo_original>
